<compile_context>
chip_gen: v6e
topology: v6e:2x2x1
jax: 0.10.0
libtpu: 0.0.40
codegen_flags: <defaults>
</compile_context>

<pallas_src>
import functools
import math

import jax
import jax.numpy as jnp
import numpy as np
from jax.experimental import pallas as pl
from jax.experimental.pallas import tpu as pltpu


def _round_up(x, m):
    return ((x + m - 1) // m) * m


def _accurate_log1p(z):
    # log1p(z) for z in [0, 1] via the classic u = 1+z correction; uses only
    # log / div / where (guaranteed Mosaic lowerings), matches np.log1p to
    # f32 rounding.  The unselected branch's inf/NaN is discarded by `where`.
    u = 1.0 + z
    return jnp.where(u == 1.0, z, jnp.log(u) * (z / (u - 1.0)))


def _make_wbce_kernel(rows, tile_rows):
    """rows: logical (un-padded) row count of the lane-dense views."""

    def kernel(x_ref, t_ref, cnt_ref, pos_ref, tb_ref, b_ref):
        i = pl.program_id(0)   # row-tile index (outer grid axis)
        r = pl.program_id(1)   # repeat index   (inner axis -> target DMA elided)

        @pl.when(jnp.logical_and(i == 0, r == 0))
        def _init():
            cnt_ref[...] = jnp.zeros_like(cnt_ref)
            pos_ref[...] = jnp.zeros_like(pos_ref)
            tb_ref[...] = jnp.zeros_like(tb_ref)
            b_ref[...] = jnp.zeros_like(b_ref)

        x = x_ref[...].astype(jnp.float32)        # (tile_rows, L) logits
        t = t_ref[...].astype(jnp.float32)        # (tile_rows, L) targets

        # Ragged-tail mask (no wrapper padding): rows past `rows` are garbage
        # and must be excluded explicitly.
        row_idx = jax.lax.broadcasted_iota(jnp.int32, (tile_rows, 1), 0)
        row_ok = (i * tile_rows + row_idx) < rows
        valid = jnp.logical_and(row_ok, t == t)   # NaN labels & tail -> invalid
        t_clean = jnp.where(valid, t, 0.0)

        # Numerically-stable BCE-with-logits, masked once (kills garbage/NaN).
        bce = (jnp.maximum(x, 0.0) - x * t_clean
               + _accurate_log1p(jnp.exp(-jnp.abs(x))))
        bce = jnp.where(valid, bce, 0.0)

        def fold_sublanes(a):
            # (tile_rows, L) -> (8, L) via log2 halving: pure VPU adds on
            # sublane-aligned slices.  The cross-sublane reduce is deferred to
            # the XLA finalize (keeps the XLU out of the steady-state loop).
            m = tile_rows
            while m > 8:
                h = m // 2
                a = a[:h, :] + a[h:m, :]
                m = h
            return a

        cnt_ref[...] += fold_sublanes(valid.astype(jnp.float32))
        pos_ref[...] += fold_sublanes(t_clean)
        tb_ref[...] += fold_sublanes(t_clean * bce)
        b_ref[...] += fold_sublanes(bce)

    return kernel


@functools.partial(jax.jit, static_argnames=("tile_rows", "block_bytes"))
def w_bce_with_logits_loss(logits, target, tile_rows=None, block_bytes=1 << 20):
    """Class-balanced, NaN-aware BCE-with-logits loss (scalar)."""
    N, C = logits.shape
    if not jnp.issubdtype(target.dtype, jnp.floating):
        target = target.astype(jnp.float32)
    TN, TC = target.shape
    assert TC == C

    # `target.repeat(10, 1)` branch: never materialized -- the same target
    # blocks are re-streamed `repeats` times (and since the repeat axis is the
    # innermost grid axis, the unchanged block index elides the redundant DMAs).
    if 10 * TN == N:
        repeats = 10
    else:
        assert TN == N, f"target rows {TN} incompatible with logits rows {N}"
        repeats = 1

    # Lane-dense view: (rows, C) -> (rows/F, F*C) with F*C a multiple of 128,
    # so every vreg lane carries useful data (everything before the per-class
    # fold is elementwise).  Pure row-major reshape -> no HBM copy.
    F = 128 // math.gcd(C, 128)
    if TN % F != 0 or TN < 8 * F:
        F = 1                      # ragged fallback: keep the (rows, C) layout
    L = F * C
    rows = TN // F

    logits_r = logits.reshape(repeats, rows, L)
    target_r = target.reshape(rows, L)

    # Row-tile size: power-of-two multiple of 8, ~block_bytes of f32 per buffer
    # (modest so double-buffered inputs stay well inside v7x's smaller VMEM).
    if tile_rows is None:
        tile_rows = max(8, min(2048, block_bytes // (L * 4)))
    tile_rows = min(tile_rows, _round_up(rows, 8))
    tile_rows = 8 * (1 << max(0, (tile_rows // 8).bit_length() - 1))
    num_tiles = pl.cdiv(rows, tile_rows)

    elems = repeats * TN * C
    cost = pl.CostEstimate(
        flops=16 * elems,
        transcendentals=2 * elems,
        bytes_accessed=int(logits.size * logits.dtype.itemsize
                           + target.size * target.dtype.itemsize
                           + 4 * 8 * L * 4),
    )

    acc = jax.ShapeDtypeStruct((8, L), jnp.float32)
    cnt8, pos8, tb8, b8 = pl.pallas_call(
        _make_wbce_kernel(rows, tile_rows),
        out_shape=(acc, acc, acc, acc),
        grid_spec=pltpu.PrefetchScalarGridSpec(
            num_scalar_prefetch=0,
            grid=(num_tiles, repeats),            # repeat axis innermost
            in_specs=[
                # logits: (repeats, rows, L); leading repeat dim squeezed away.
                pl.BlockSpec((None, tile_rows, L), lambda i, r: (r, i, 0)),
                # target: same row-tile for every repeat -> DMA elided 9/10.
                pl.BlockSpec((tile_rows, L), lambda i, r: (i, 0)),
            ],
            out_specs=[pl.BlockSpec((8, L), lambda i, r: (0, 0))] * 4,
        ),
        compiler_params=pltpu.CompilerParams(
            dimension_semantics=("arbitrary", "arbitrary")),
        cost_estimate=cost,
    )(logits_r, target_r)

    # Tiny finalize in XLA (a few KB): fold sublanes and the F sub-columns per
    # class, then the scalar class-balanced weights and the class mean.
    def per_class(a):                              # (8, L) -> (C,)
        return a.sum(axis=0).reshape(F, C).sum(axis=0)

    cnt = per_class(cnt8)        # per-class valid count
    pos = per_class(pos8)        # per-class positive count
    tb = per_class(tb8)          # per-class sum(t * bce)
    bs = per_class(b8)           # per-class sum(bce)

    s = jnp.sum(cnt)             # global valid count (f32: exact up to 2^24)
    p = jnp.sum(pos)             # global positive count
    balanced = jnp.logical_and(p != 0.0, p != s)
    p_safe = jnp.where(p > 0.0, p, 1.0)
    q_safe = jnp.where(s - p > 0.0, s - p, 1.0)
    # w = wa * t + wb  -> scalar affine weight, never materialized per element.
    wa = jnp.where(balanced, s / p_safe - s / q_safe, 1.0)
    wb = jnp.where(balanced, s / q_safe, 1.0)

    class_ok = cnt > 0.0                           # mirrors f[f == f]
    f = (wa * tb + wb * bs) / jnp.where(class_ok, cnt, 1.0)
    return (jnp.sum(jnp.where(class_ok, f, 0.0))
            / jnp.sum(class_ok.astype(jnp.float32)))


def _reference_numpy(inp, tgt):
    """Direct numpy transcription of the PyTorch forward for verification."""
    if 10 * tgt.shape[0] == inp.shape[0]:
        tgt = np.tile(tgt, (10, 1))
    t2 = tgt[tgt == tgt]
    p = int(t2.sum())
    s = int(np.prod(t2.shape))
    fs = []
    for i in range(inp.shape[1]):
        x = inp[:, i]
        t = tgt[:, i]
        good = t == t
        x, t = x[good], t[good]
        if x.size == 0:
            continue                               # f[i] would be NaN -> dropped
        if p != 0 and p != s:
            w = t * (s / p - s / (s - p)) + s / (s - p)
        else:
            w = t + 1
        per_elem = np.maximum(x, 0.0) - x * t + np.log1p(np.exp(-np.abs(x)))
        fs.append(np.mean(w * per_elem))
    return float(np.mean(fs))


if __name__ == "__main__":
    key = jax.random.PRNGKey(0)
    k1, k2, k3, k4, k5, k6 = jax.random.split(key, 6)
    C = 4

    # Case 1: lane-dense path (TN multiple of 32 for C=4 -> (8, 128) blocks),
    # NaN labels + one fully-invalid class (exercises the f[f==f] drop).
    N1 = 256
    logits1 = jax.random.normal(k1, (N1, C), dtype=jnp.float32)
    target1 = jax.random.bernoulli(k2, 0.3, (N1, C)).astype(jnp.float32)
    target1 = target1.at[0, 1].set(jnp.nan)
    target1 = target1.at[:, 2].set(jnp.nan)        # class 2 entirely invalid
    loss1 = jax.block_until_ready(w_bce_with_logits_loss(logits1, target1))
    ref1 = _reference_numpy(np.asarray(logits1), np.asarray(target1))
    assert np.allclose(float(loss1), ref1, rtol=1e-4, atol=1e-5), (float(loss1), ref1)

    # Case 2: ragged fallback layout + multi-tile grid + in-kernel tail masking
    # (48 rows, 32-row tiles -> second tile is partial, no padding copies).
    N2 = 48
    logits2 = jax.random.normal(k3, (N2, C), dtype=jnp.float32)
    target2 = jax.random.bernoulli(k4, 0.5, (N2, C)).astype(jnp.float32)
    target2 = target2.at[5, 3].set(jnp.nan)
    loss2 = jax.block_until_ready(
        w_bce_with_logits_loss(logits2, target2, tile_rows=32))
    ref2 = _reference_numpy(np.asarray(logits2), np.asarray(target2))
    assert np.allclose(float(loss2), ref2, rtol=1e-4, atol=1e-5), (float(loss2), ref2)

    # Case 3: 10x-repeat branch (len(input) == 10 * len(target)); target block
    # is re-used across the innermost repeat axis without re-fetching.
    TN = 256
    logits3 = jax.random.normal(k5, (10 * TN, C), dtype=jnp.float32)
    target3 = jax.random.bernoulli(k6, 0.4, (TN, C)).astype(jnp.float32)
    target3 = target3.at[3, 0].set(jnp.nan)
    loss3 = jax.block_until_ready(w_bce_with_logits_loss(logits3, target3))
    ref3 = _reference_numpy(np.asarray(logits3), np.asarray(target3))
    assert np.allclose(float(loss3), ref3, rtol=1e-4, atol=1e-5), (float(loss3), ref3)

    print("KERNEL_OK")
</pallas_src>

<mosaic_0001>
module attributes {stable_mosaic.version = 11 : i64} {
  func.func @kernel(%arg0: i32, %arg1: i32, %arg2: memref<1x8x128xf32, #tpu.memory_space<vmem>>, %arg3: memref<8x128xf32, #tpu.memory_space<vmem>>, %arg4: memref<8x128xf32, #tpu.memory_space<vmem>>, %arg5: memref<8x128xf32, #tpu.memory_space<vmem>>, %arg6: memref<8x128xf32, #tpu.memory_space<vmem>>, %arg7: memref<8x128xf32, #tpu.memory_space<vmem>>) attributes {dimension_semantics = [#tpu.dimension_semantics<arbitrary>, #tpu.dimension_semantics<arbitrary>], iteration_bounds = array<i64: 1, 1>, scalar_prefetch = 0 : i64, scratch_operands = 0 : i64, tpu.core_type = #tpu.core_type<tc>, window_params = [{transform_indices = @transform_0, window_bounds = array<i64: 1, 8, 128>}, {transform_indices = @transform_1, window_bounds = array<i64: 8, 128>}, {pipeline_mode = #tpu.pipeline_mode<synchronous>, transform_indices = @transform_2, window_bounds = array<i64: 8, 128>}, {pipeline_mode = #tpu.pipeline_mode<synchronous>, transform_indices = @transform_3, window_bounds = array<i64: 8, 128>}, {pipeline_mode = #tpu.pipeline_mode<synchronous>, transform_indices = @transform_4, window_bounds = array<i64: 8, 128>}, {pipeline_mode = #tpu.pipeline_mode<synchronous>, transform_indices = @transform_5, window_bounds = array<i64: 8, 128>}]} {
    %c0_i32 = arith.constant 0 : i32
    %0 = arith.cmpi eq, %arg0, %c0_i32 : i32
    %c0_i32_0 = arith.constant 0 : i32
    %1 = arith.cmpi eq, %arg1, %c0_i32_0 : i32
    %2 = arith.andi %0, %1 : i1
    %3 = arith.extui %2 : i1 to i32
    %c0_i32_1 = arith.constant 0 : i32
    %4 = arith.cmpi ne, %3, %c0_i32_1 : i32
    scf.if %4 {
      %cst_29 = arith.constant 0.000000e+00 : f32
      %55 = vector.broadcast %cst_29 : f32 to vector<8x128xf32>
      %c0_30 = arith.constant 0 : index
      %c0_31 = arith.constant 0 : index
      %56 = vector.load %arg4[%c0_30, %c0_31] : memref<8x128xf32, #tpu.memory_space<vmem>>, vector<8x128xf32>
      tpu.vector_store %arg4[%c0_30, %c0_31], %55 {strides = array<i32>} : memref<8x128xf32, #tpu.memory_space<vmem>>, vector<8x128xf32>,
      %cst_32 = arith.constant 0.000000e+00 : f32
      %57 = vector.broadcast %cst_32 : f32 to vector<8x128xf32>
      %c0_33 = arith.constant 0 : index
      %c0_34 = arith.constant 0 : index
      %58 = vector.load %arg5[%c0_33, %c0_34] : memref<8x128xf32, #tpu.memory_space<vmem>>, vector<8x128xf32>
      tpu.vector_store %arg5[%c0_33, %c0_34], %57 {strides = array<i32>} : memref<8x128xf32, #tpu.memory_space<vmem>>, vector<8x128xf32>,
      %cst_35 = arith.constant 0.000000e+00 : f32
      %59 = vector.broadcast %cst_35 : f32 to vector<8x128xf32>
      %c0_36 = arith.constant 0 : index
      %c0_37 = arith.constant 0 : index
      %60 = vector.load %arg6[%c0_36, %c0_37] : memref<8x128xf32, #tpu.memory_space<vmem>>, vector<8x128xf32>
      tpu.vector_store %arg6[%c0_36, %c0_37], %59 {strides = array<i32>} : memref<8x128xf32, #tpu.memory_space<vmem>>, vector<8x128xf32>,
      %cst_38 = arith.constant 0.000000e+00 : f32
      %61 = vector.broadcast %cst_38 : f32 to vector<8x128xf32>
      %c0_39 = arith.constant 0 : index
      %c0_40 = arith.constant 0 : index
      %62 = vector.load %arg7[%c0_39, %c0_40] : memref<8x128xf32, #tpu.memory_space<vmem>>, vector<8x128xf32>
      tpu.vector_store %arg7[%c0_39, %c0_40], %61 {strides = array<i32>} : memref<8x128xf32, #tpu.memory_space<vmem>>, vector<8x128xf32>,
    } else {
    }
    %c0 = arith.constant 0 : index
    %c0_2 = arith.constant 0 : index
    %c0_3 = arith.constant 0 : index
    %5 = vector.load %arg2[%c0, %c0_2, %c0_3] : memref<1x8x128xf32, #tpu.memory_space<vmem>>, vector<1x8x128xf32>
    %6 = vector.shape_cast %5 : vector<1x8x128xf32> to vector<8x128xf32>
    %c0_4 = arith.constant 0 : index
    %c0_5 = arith.constant 0 : index
    %7 = vector.load %arg3[%c0_4, %c0_5] : memref<8x128xf32, #tpu.memory_space<vmem>>, vector<8x128xf32>
    %8 = tpu.iota {dimensions = array<i32: 0>} : vector<8x1xi32>
    %c8_i32 = arith.constant 8 : i32
    %9 = arith.muli %arg0, %c8_i32 : i32
    %10 = vector.broadcast %9 : i32 to vector<8x1xi32>
    %11 = arith.addi %10, %8 : vector<8x1xi32>
    %c8_i32_6 = arith.constant 8 : i32
    %12 = vector.broadcast %c8_i32_6 : i32 to vector<8x1xi32>
    %13 = arith.cmpi slt, %11, %12 : vector<8x1xi32>
    %14 = arith.cmpf oeq, %7, %7 : vector<8x128xf32>
    %15 = vector.broadcast %13 : vector<8x1xi1> to vector<8x128xi1>
    %16 = arith.andi %15, %14 : vector<8x128xi1>
    %cst = arith.constant 0.000000e+00 : f32
    %17 = vector.broadcast %cst : f32 to vector<8x128xf32>
    %18 = arith.select %16, %7, %17 : vector<8x128xi1>, vector<8x128xf32>
    %cst_7 = arith.constant 0.000000e+00 : f32
    %19 = vector.broadcast %cst_7 : f32 to vector<8x128xf32>
    %20 = arith.maximumf %6, %19 : vector<8x128xf32>
    %21 = arith.mulf %6, %18 : vector<8x128xf32>
    %22 = arith.subf %20, %21 : vector<8x128xf32>
    %23 = math.absf %6 : vector<8x128xf32>
    %cst_8 = arith.constant 0.000000e+00 : f32
    %24 = vector.broadcast %cst_8 : f32 to vector<8x128xf32>
    %25 = arith.subf %24, %23 : vector<8x128xf32>
    %26 = math.exp %25 : vector<8x128xf32>
    %cst_9 = arith.constant 1.000000e+00 : f32
    %27 = vector.broadcast %cst_9 : f32 to vector<8x128xf32>
    %28 = arith.addf %27, %26 : vector<8x128xf32>
    %cst_10 = arith.constant 1.000000e+00 : f32
    %29 = vector.broadcast %cst_10 : f32 to vector<8x128xf32>
    %30 = arith.cmpf oeq, %28, %29 : vector<8x128xf32>
    %31 = math.log %28 : vector<8x128xf32>
    %cst_11 = arith.constant 1.000000e+00 : f32
    %32 = vector.broadcast %cst_11 : f32 to vector<8x128xf32>
    %33 = arith.subf %28, %32 : vector<8x128xf32>
    %34 = arith.divf %26, %33 : vector<8x128xf32>
    %35 = arith.mulf %31, %34 : vector<8x128xf32>
    %36 = arith.select %30, %26, %35 : vector<8x128xi1>, vector<8x128xf32>
    %37 = arith.addf %22, %36 : vector<8x128xf32>
    %cst_12 = arith.constant 0.000000e+00 : f32
    %38 = vector.broadcast %cst_12 : f32 to vector<8x128xf32>
    %39 = arith.select %16, %37, %38 : vector<8x128xi1>, vector<8x128xf32>
    %c0_13 = arith.constant 0 : index
    %c0_14 = arith.constant 0 : index
    %40 = vector.load %arg4[%c0_13, %c0_14] : memref<8x128xf32, #tpu.memory_space<vmem>>, vector<8x128xf32>
    %41 = arith.extui %16 : vector<8x128xi1> to vector<8x128xi32>
    %42 = arith.sitofp %41 : vector<8x128xi32> to vector<8x128xf32>
    %43 = arith.addf %40, %42 : vector<8x128xf32>
    %c0_15 = arith.constant 0 : index
    %c0_16 = arith.constant 0 : index
    %44 = vector.load %arg4[%c0_15, %c0_16] : memref<8x128xf32, #tpu.memory_space<vmem>>, vector<8x128xf32>
    tpu.vector_store %arg4[%c0_15, %c0_16], %43 {strides = array<i32>} : memref<8x128xf32, #tpu.memory_space<vmem>>, vector<8x128xf32>,
    %c0_17 = arith.constant 0 : index
    %c0_18 = arith.constant 0 : index
    %45 = vector.load %arg5[%c0_17, %c0_18] : memref<8x128xf32, #tpu.memory_space<vmem>>, vector<8x128xf32>
    %46 = arith.addf %45, %18 : vector<8x128xf32>
    %c0_19 = arith.constant 0 : index
    %c0_20 = arith.constant 0 : index
    %47 = vector.load %arg5[%c0_19, %c0_20] : memref<8x128xf32, #tpu.memory_space<vmem>>, vector<8x128xf32>
    tpu.vector_store %arg5[%c0_19, %c0_20], %46 {strides = array<i32>} : memref<8x128xf32, #tpu.memory_space<vmem>>, vector<8x128xf32>,
    %c0_21 = arith.constant 0 : index
    %c0_22 = arith.constant 0 : index
    %48 = vector.load %arg6[%c0_21, %c0_22] : memref<8x128xf32, #tpu.memory_space<vmem>>, vector<8x128xf32>
    %49 = arith.mulf %18, %39 : vector<8x128xf32>
    %50 = arith.addf %48, %49 : vector<8x128xf32>
    %c0_23 = arith.constant 0 : index
    %c0_24 = arith.constant 0 : index
    %51 = vector.load %arg6[%c0_23, %c0_24] : memref<8x128xf32, #tpu.memory_space<vmem>>, vector<8x128xf32>
    tpu.vector_store %arg6[%c0_23, %c0_24], %50 {strides = array<i32>} : memref<8x128xf32, #tpu.memory_space<vmem>>, vector<8x128xf32>,
    %c0_25 = arith.constant 0 : index
    %c0_26 = arith.constant 0 : index
    %52 = vector.load %arg7[%c0_25, %c0_26] : memref<8x128xf32, #tpu.memory_space<vmem>>, vector<8x128xf32>
    %53 = arith.addf %52, %39 : vector<8x128xf32>
    %c0_27 = arith.constant 0 : index
    %c0_28 = arith.constant 0 : index
    %54 = vector.load %arg7[%c0_27, %c0_28] : memref<8x128xf32, #tpu.memory_space<vmem>>, vector<8x128xf32>
    tpu.vector_store %arg7[%c0_27, %c0_28], %53 {strides = array<i32>} : memref<8x128xf32, #tpu.memory_space<vmem>>, vector<8x128xf32>,
    return
  }
  func.func @transform_0(%arg0: i32, %arg1: i32) -> (i32, i32, i32) {
    %c0_i32 = arith.constant 0 : i32
    %c0_i32_0 = arith.constant 0 : i32
    return %arg1, %arg0, %c0_i32 : i32, i32, i32
  }
  func.func @transform_1(%arg0: i32, %arg1: i32) -> (i32, i32) {
    %c0_i32 = arith.constant 0 : i32
    %c0_i32_0 = arith.constant 0 : i32
    return %arg0, %c0_i32 : i32, i32
  }
  func.func @transform_2(%arg0: i32, %arg1: i32) -> (i32, i32) {
    %c0_i32 = arith.constant 0 : i32
    %c0_i32_0 = arith.constant 0 : i32
    %c0_i32_1 = arith.constant 0 : i32
    return %c0_i32, %c0_i32_0 : i32, i32
  }
  func.func @transform_3(%arg0: i32, %arg1: i32) -> (i32, i32) {
    %c0_i32 = arith.constant 0 : i32
    %c0_i32_0 = arith.constant 0 : i32
    %c0_i32_1 = arith.constant 0 : i32
    return %c0_i32, %c0_i32_0 : i32, i32
  }
  func.func @transform_4(%arg0: i32, %arg1: i32) -> (i32, i32) {
    %c0_i32 = arith.constant 0 : i32
    %c0_i32_0 = arith.constant 0 : i32
    %c0_i32_1 = arith.constant 0 : i32
    return %c0_i32, %c0_i32_0 : i32, i32
  }
  func.func @transform_5(%arg0: i32, %arg1: i32) -> (i32, i32) {
    %c0_i32 = arith.constant 0 : i32
    %c0_i32_0 = arith.constant 0 : i32
    %c0_i32_1 = arith.constant 0 : i32
    return %c0_i32, %c0_i32_0 : i32, i32
  }
}

</mosaic_0001>

<llo_original>
// kernel: w_bce_with_logits_loss.1
$region0: #{w_bce_with_logits_loss.1}
  #allocation0 [shape = 'u32[]', space=smem, size = 0x4, offset = 0x4, fixed_abs, tag = 'smem constant byte address 0x4 - core index']
  #allocation1 [shape = 'u32[144,128]{1,0:T(1,128)}', space=vmem, size = 0x12000, scoped, tag = 'internal scratch']
  %s0 = inlined_call_operand.vmem [shape: f32[1,8,128], index: 0, kind: input, shape index: {}]
  %s1 = inlined_call_operand.vmem [shape: f32[8,128], index: 1, kind: input, shape index: {}]
  %s2 = inlined_call_operand.vmem [shape: f32[8,128], index: 2, kind: output, shape index: {0}]
  %s3 = inlined_call_operand.vmem [shape: f32[8,128], index: 3, kind: output, shape index: {1}]
  %s4 = inlined_call_operand.vmem [shape: f32[8,128], index: 4, kind: output, shape index: {2}]
  %s5 = inlined_call_operand.vmem [shape: f32[8,128], index: 5, kind: output, shape index: {3}]
  %6 = xla_tuple %s2, %s3, %s4, %s5
  %s7 = sld [smem:[#allocation0]]
  $region46: #{w_bce_with_logits_loss.1} parent=0
    _
  %s9 = ssub.s32 1, %s7
  %s10 = scalar_select 0, %s9, %s7
  // Predicated region
  $region2: #{w_bce_with_logits_loss.1} parent=0 // pred_check
    _
  $region3: #{w_bce_with_logits_loss.1} parent=0 // pred_check_branch
    %12 = sbr.rel (0) target = $region5
  $region4: #{w_bce_with_logits_loss.1} parent=0 // pred_region
    _
  $region5: #{w_bce_with_logits_loss.1} parent=0 // pred_fallthru
    _
  // Predicated region
  $region6: #{w_bce_with_logits_loss.1} parent=0 // pred_check
    _
  $region7: #{w_bce_with_logits_loss.1} parent=0 // pred_check_branch
    %14 = sbr.rel (0) target = $region9
  $region8: #{w_bce_with_logits_loss.1} parent=0 // pred_region
    _
  $region9: #{w_bce_with_logits_loss.1} parent=0 // pred_fallthru
    _
  %p15 = scmp.eq.s32.totalorder 0, 0
  %p16 = scmp.eq.s32.totalorder 0, 0
  %p17 = pnand %p15, %p16
  %p18 = pneg %p17
  // Predicated region
  $region10: #{w_bce_with_logits_loss.1} parent=0 // pred_check
    _
  $region11: #{w_bce_with_logits_loss.1} parent=0 // pred_check_branch
    %20 = sbr.rel (%p17) target = $region13
  $region12: #{w_bce_with_logits_loss.1} parent=0 // pred_region
    %21 = vst [vmem:[%s2] sm:$0xff] 0.0
    %22 = vst [vmem:[%s3] sm:$0xff] 0.0
    %23 = vst [vmem:[%s4] sm:$0xff] 0.0
    %24 = vst [vmem:[%s5] sm:$0xff] 0.0
  $region13: #{w_bce_with_logits_loss.1} parent=0 // pred_fallthru
    _
  %v25 = vld [vmem:[%s0] sm:$0xff]
  %v26 = vld [vmem:[%s1] sm:$0xff]
  %v27 = vlaneseq
  %v28 = vshrl.u32 %v27, 7
  %s29 = smul.u32 0, 8
  %v30 = vstv %s29
  %v31 = vadd.s32 %v30, %v28
  %vm32 = vcmp.lt.s32.totalorder %v31, 8
  %vm33 = vcmp.eq.f32.partialorder %v26, %v26
  %v34 = vsel %vm32, 1, 0
  %vm35 = vcmp.eq.s32.totalorder %v34, 1
  %vm36 = vmand %vm35, %vm33
  %v37 = vsel %vm36, %v26, 0.0
  %v38 = vmax.f32 %v25, 0.0
  %v39 = vmul.f32 %v25, %v37
  %v40 = vsub.f32 %v38, %v39
  %v41 = vand.u32 2147483647, %v25
  %v42 = vsub.f32 0.0, %v41
  %v43 = vmul.f32 %v42, 1.442695
  %v44 = vpow.pop %v43
  %v45 = vadd.f32 %v44, 1.0
  %vm46 = vcmp.eq.f32.partialorder %v45, 1.0
  %v47 = vlog2.pop %v45
  %v48 = vmul.f32 %v47, 0.6931472
  %v49 = vsub.f32 %v45, 1.0
  %v50 = vrcp.pop %v49
  %v51 = vmul.f32 %v44, %v50
  %v52 = vmul.f32 %v48, %v51
  %v53 = vsel %vm46, %v44, %v52
  %v54 = vadd.f32 %v40, %v53
  %v55 = vsel %vm36, %v54, 0.0
  %v56 = vld [vmem:[%s2] sm:$0xff]
  %v57 = vsel %vm36, 1, 0
  %v58 = vcvt.s32.f32 %v57
  %v59 = vadd.f32 %v56, %v58
  %60 = vst [vmem:[%s2] sm:$0xff] %v59
  %v61 = vld [vmem:[%s3] sm:$0xff]
  %v62 = vadd.f32 %v61, %v37
  %63 = vst [vmem:[%s3] sm:$0xff] %v62
  %v64 = vld [vmem:[%s4] sm:$0xff]
  %v65 = vmul.f32 %v37, %v55
  %v66 = vadd.f32 %v64, %v65
  %67 = vst [vmem:[%s4] sm:$0xff] %v66
  %v68 = vld [vmem:[%s5] sm:$0xff]
  %v69 = vadd.f32 %v68, %v55
  %70 = vst [vmem:[%s5] sm:$0xff] %v69
  // Predicated region
  $region14: #{w_bce_with_logits_loss.1} parent=0 // pred_check
    _
  $region15: #{w_bce_with_logits_loss.1} parent=0 // pred_check_branch
    %72 = sbr.rel (0) target = $region17
  $region16: #{w_bce_with_logits_loss.1} parent=0 // pred_region
    _
  $region17: #{w_bce_with_logits_loss.1} parent=0 // pred_fallthru
    _
  // Predicated region
  $region18: #{w_bce_with_logits_loss.1} parent=0 // pred_check
    _
  $region19: #{w_bce_with_logits_loss.1} parent=0 // pred_check_branch
    %74 = sbr.rel (0) target = $region21
  $region20: #{w_bce_with_logits_loss.1} parent=0 // pred_region
    _
  $region21: #{w_bce_with_logits_loss.1} parent=0 // pred_fallthru
    _
  // Predicated region
  $region22: #{w_bce_with_logits_loss.1} parent=0 // pred_check
    _
  $region23: #{w_bce_with_logits_loss.1} parent=0 // pred_check_branch
    %76 = sbr.rel (0) target = $region25
  $region24: #{w_bce_with_logits_loss.1} parent=0 // pred_region
    _
  $region25: #{w_bce_with_logits_loss.1} parent=0 // pred_fallthru
    _
  // Predicated region
  $region26: #{w_bce_with_logits_loss.1} parent=0 // pred_check
    _
  $region27: #{w_bce_with_logits_loss.1} parent=0 // pred_check_branch
    %78 = sbr.rel (0) target = $region29
  $region28: #{w_bce_with_logits_loss.1} parent=0 // pred_region
    _
  $region29: #{w_bce_with_logits_loss.1} parent=0 // pred_fallthru
    _
  // Predicated region
  $region30: #{w_bce_with_logits_loss.1} parent=0 // pred_check
    _
  $region31: #{w_bce_with_logits_loss.1} parent=0 // pred_check_branch
    %80 = sbr.rel (0) target = $region33
  $region32: #{w_bce_with_logits_loss.1} parent=0 // pred_region
    _
  $region33: #{w_bce_with_logits_loss.1} parent=0 // pred_fallthru
    _
  // Predicated region
  $region34: #{w_bce_with_logits_loss.1} parent=0 // pred_check
    _
  $region35: #{w_bce_with_logits_loss.1} parent=0 // pred_check_branch
    %82 = sbr.rel (0) target = $region37
  $region36: #{w_bce_with_logits_loss.1} parent=0 // pred_region
    _
  $region37: #{w_bce_with_logits_loss.1} parent=0 // pred_fallthru
    _
  // Predicated region
  $region38: #{w_bce_with_logits_loss.1} parent=0 // pred_check
    _
  $region39: #{w_bce_with_logits_loss.1} parent=0 // pred_check_branch
    %84 = sbr.rel (0) target = $region41
  $region40: #{w_bce_with_logits_loss.1} parent=0 // pred_region
    _
  $region41: #{w_bce_with_logits_loss.1} parent=0 // pred_fallthru
    _
  // Predicated region
  $region42: #{w_bce_with_logits_loss.1} parent=0 // pred_check
    _
  $region43: #{w_bce_with_logits_loss.1} parent=0 // pred_check_branch
    %86 = sbr.rel (0) target = $region45
  $region44: #{w_bce_with_logits_loss.1} parent=0 // pred_region
    _
  $region45: #{w_bce_with_logits_loss.1} parent=0 // pred_fallthru
    _

</llo_original>
